<compile_context>
chip_gen: v7x
topology: tpu7x:2x2x1
jax: 0.10.0
libtpu: 0.0.40
codegen_flags: <defaults>
</compile_context>

<pallas_src>
import functools

import jax
import jax.numpy as jnp
from jax.experimental import pallas as pl
from jax.experimental.pallas import tpu as pltpu


def _round_up(v, m):
    return (v + m - 1) // m * m


# ---------------------------------------------------------------------------
# Kernel: one recurrent step per (batch_block, t) grid point.
# ---------------------------------------------------------------------------
def rnn_agent_kernel(
    x_ref,      # (TB, D)      bf16  observations for step t
    h0_ref,     # (TB, Hx)     f32   initial hidden state (padded)
    w1_ref,     # (D,  Hx)     bf16  fc1 weight (transposed, padded)   [resident]
    b1_ref,     # (1,  Hx)     f32   fc1 bias                          [resident]
    wi_ref,     # (Hx, Gp)     bf16  GRU input weights, tight [r|z|n]  [resident]
    bi_ref,     # (1,  Gp)     f32   [b_ir+b_hr | b_iz+b_hz | b_in]    [resident]
    wh_ref,     # (Hx, Gp)     bf16  GRU hidden weights, tight [r|z|n] [resident]
    bhn_ref,    # (1,  Hx)     f32   b_hn (must stay inside the r-gate)[resident]
    w2_ref,     # (Hx, Ap)     bf16  fc2 weight (transposed, padded)   [resident]
    b2_ref,     # (1,  Ap)     f32   fc2 bias                          [resident]
    q_ref,      # (TB, Ap)     f32   output: action values for step t
    hout_ref,   # (TB, Hx)     f32   output: final hidden state
    h_scr,      # (TB, Hx)     f32   VMEM scratch: running hidden state
    *,
    hidden_dim,
):
    H = hidden_dim
    Hx = h_scr.shape[-1]          # lane-padded hidden width
    Gp = wi_ref.shape[-1]         # lane-padded 3*H gate width
    t = pl.program_id(1)

    # Initialise the VMEM-resident hidden state at the first step of this
    # batch block (t is the innermost grid axis).
    @pl.when(t == 0)
    def _():
        h_scr[...] = h0_ref[...]

    h = h_scr[...]                                            # (TB, Hx) f32

    # --- fc1 + ReLU (bf16 MXU path, f32 accumulate) -------------------------
    xh = jnp.dot(x_ref[...], w1_ref[...],
                 preferred_element_type=jnp.float32) + b1_ref[...]
    xh = jnp.maximum(xh, 0.0)                                 # (TB, Hx) f32

    # --- GRUCell: two fused gate matmuls over tightly packed [r|z|n] lanes --
    gi = jnp.dot(xh.astype(wi_ref.dtype), wi_ref[...],
                 preferred_element_type=jnp.float32) + bi_ref[...]   # (TB, Gp)
    gh = jnp.dot(h.astype(wh_ref.dtype), wh_ref[...],
                 preferred_element_type=jnp.float32)                 # (TB, Gp)

    # Gate g occupies lanes [g*H, (g+1)*H).  r is already lane-0 aligned;
    # re-align z and n with XLU rolls, then take the Hx-wide (lane-block
    # aligned) prefix to match the hidden-state layout.
    rz = jax.nn.sigmoid(gi + gh)                              # r/z biases pre-summed
    r = rz[:, :Hx]
    z = pltpu.roll(rz, Gp - H, 1)[:, :Hx]
    gin = pltpu.roll(gi, Gp - 2 * H, 1)[:, :Hx]               # i_n + b_in
    ghn = pltpu.roll(gh, Gp - 2 * H, 1)[:, :Hx]               # h_n
    n = jnp.tanh(gin + r * (ghn + bhn_ref[...]))              # b_hn inside r-gate
    h_new = (1.0 - z) * n + z * h                             # (TB, Hx) f32

    h_scr[...] = h_new

    # --- fc2 -----------------------------------------------------------------
    q = jnp.dot(h_new.astype(w2_ref.dtype), w2_ref[...],
                preferred_element_type=jnp.float32) + b2_ref[...]
    q_ref[...] = q.astype(q_ref.dtype)

    # Final hidden state written back once per batch block.
    @pl.when(t == pl.num_programs(1) - 1)
    def _():
        hout_ref[...] = h_new


# ---------------------------------------------------------------------------
# Wrappers
# ---------------------------------------------------------------------------
def rnn_agent_rollout(x_seq, hidden_state, kp):
    """x_seq: (T, B, input_shape); hidden_state: (..., H) initial hidden.

    Runs T recurrent steps in a single pallas_call (weights VMEM-resident,
    hidden state kept in VMEM between steps).  Returns (q_seq (T,B,A), h (B,H)).
    """
    H, D, A = kp["H"], kp["D"], kp["A"]
    Hx, Gp, Ap = kp["Hx"], kp["Gp"], kp["Ap"]
    T, B = x_seq.shape[0], x_seq.shape[1]

    # Batch padding / blocking: one block if it fits, else 256-row blocks over
    # a "parallel" leading grid axis (lets v7x split rows across its 2 TCs).
    Bp = _round_up(max(B, 16), 16)
    TB = min(Bp, 256)
    Bp = _round_up(Bp, TB)
    nb = Bp // TB

    x = jnp.pad(x_seq, ((0, 0), (0, Bp - B), (0, 0))).astype(jnp.bfloat16)
    h0 = hidden_state.reshape(-1, H).astype(jnp.float32)
    if h0.shape[0] == 1 and B > 1:
        h0 = jnp.broadcast_to(h0, (B, H))
    h0 = jnp.pad(h0, ((0, Bp - h0.shape[0]), (0, Hx - H)))

    const = lambda b, t: (0, 0)
    in_specs = [
        pl.BlockSpec((None, TB, D), lambda b, t: (t, b, 0)),   # x, per step
        pl.BlockSpec((TB, Hx), lambda b, t: (b, 0)),           # h0
        pl.BlockSpec((D, Hx), const),                          # w1  (resident)
        pl.BlockSpec((1, Hx), const),                          # b1
        pl.BlockSpec((Hx, Gp), const),                         # wi
        pl.BlockSpec((1, Gp), const),                          # bi
        pl.BlockSpec((Hx, Gp), const),                         # wh
        pl.BlockSpec((1, Hx), const),                          # bhn
        pl.BlockSpec((Hx, Ap), const),                         # w2
        pl.BlockSpec((1, Ap), const),                          # b2
    ]
    out_specs = (
        pl.BlockSpec((None, TB, Ap), lambda b, t: (t, b, 0)),  # q, per step
        pl.BlockSpec((TB, Hx), lambda b, t: (b, 0)),           # final hidden
    )

    weight_bytes = 2 * (D * Hx + 2 * Hx * Gp + Hx * Ap) + 4 * (2 * Hx + Gp + Ap)
    cost = pl.CostEstimate(
        flops=2 * T * Bp * (D * Hx + 2 * Hx * Gp + Hx * Ap),
        transcendentals=3 * T * Bp * Hx,
        bytes_accessed=weight_bytes + 2 * T * Bp * D + 4 * T * Bp * Ap
        + 4 * 2 * Bp * Hx,
    )

    q_pad, h_pad = pl.pallas_call(
        functools.partial(rnn_agent_kernel, hidden_dim=H),
        grid=(nb, T),
        in_specs=in_specs,
        out_specs=out_specs,
        out_shape=(jax.ShapeDtypeStruct((T, Bp, Ap), jnp.float32),
                   jax.ShapeDtypeStruct((Bp, Hx), jnp.float32)),
        scratch_shapes=[pltpu.VMEM((TB, Hx), jnp.float32)],
        compiler_params=pltpu.CompilerParams(
            dimension_semantics=("parallel", "arbitrary")),
        cost_estimate=cost,
    )(x, h0, kp["w1"], kp["b1"], kp["wi"], kp["bi"], kp["wh"], kp["bhn"],
      kp["w2"], kp["b2"])

    # Single slice per rollout (not per step).
    return q_pad[:, :B, :A], h_pad[:B, :H]


def rnn_agent_forward(inputs, hidden_state, kp):
    """Single recurrent step: matches RNNAgent.forward(inputs, hidden_state)."""
    q_seq, h = rnn_agent_rollout(inputs[None], hidden_state, kp)
    return q_seq[0], h


# ---------------------------------------------------------------------------
# Parameters
# ---------------------------------------------------------------------------
def init_params(key, input_shape, rnn_hidden_dim, n_actions):
    """PyTorch-layout synthetic params (uniform +/- 1/sqrt(fan_in))."""
    ks = jax.random.split(key, 8)
    H, D, A = rnn_hidden_dim, input_shape, n_actions

    def u(k, shape, fan_in):
        bound = 1.0 / float(fan_in) ** 0.5
        return jax.random.uniform(k, shape, jnp.float32, -bound, bound)

    return dict(
        fc1_w=u(ks[0], (H, D), D), fc1_b=u(ks[1], (H,), D),
        gru_w_ih=u(ks[2], (3 * H, H), H), gru_w_hh=u(ks[3], (3 * H, H), H),
        gru_b_ih=u(ks[4], (3 * H,), H), gru_b_hh=u(ks[5], (3 * H,), H),
        fc2_w=u(ks[6], (A, H), H), fc2_b=u(ks[7], (A,), H),
    )


def pack_params(raw, lane=128, weight_dtype=jnp.bfloat16):
    """Transpose, fuse, tightly lane-pack and bf16-cast PyTorch-layout params."""
    H, D = raw["fc1_w"].shape
    A = raw["fc2_w"].shape[0]
    Hx = _round_up(H, lane)          # hidden-state lane width
    Gp = _round_up(3 * H, lane)      # tight [r|z|n] gate lane width
    Ap = _round_up(A, lane)

    w1 = jnp.zeros((D, Hx), jnp.float32).at[:, :H].set(raw["fc1_w"].T)
    b1 = jnp.zeros((1, Hx), jnp.float32).at[0, :H].set(raw["fc1_b"])

    # GRUCell: PyTorch packs gate rows as [r | z | n], each (H, H).
    wih, whh = raw["gru_w_ih"], raw["gru_w_hh"]
    bih, bhh = raw["gru_b_ih"], raw["gru_b_hh"]
    wi = jnp.zeros((Hx, Gp), jnp.float32)
    wh = jnp.zeros((Hx, Gp), jnp.float32)
    for g in range(3):
        wi = wi.at[:H, g * H:(g + 1) * H].set(wih[g * H:(g + 1) * H, :].T)
        wh = wh.at[:H, g * H:(g + 1) * H].set(whh[g * H:(g + 1) * H, :].T)
    bi = jnp.zeros((1, Gp), jnp.float32)
    bi = bi.at[0, 0:H].set(bih[0:H] + bhh[0:H])              # r: pre-summed
    bi = bi.at[0, H:2 * H].set(bih[H:2 * H] + bhh[H:2 * H])  # z: pre-summed
    bi = bi.at[0, 2 * H:3 * H].set(bih[2 * H:3 * H])         # n: b_in only
    bhn = jnp.zeros((1, Hx), jnp.float32).at[0, :H].set(bhh[2 * H:3 * H])

    w2 = jnp.zeros((Hx, Ap), jnp.float32).at[:H, :A].set(raw["fc2_w"].T)
    b2 = jnp.zeros((1, Ap), jnp.float32).at[0, :A].set(raw["fc2_b"])

    return dict(
        w1=w1.astype(weight_dtype), b1=b1,
        wi=wi.astype(weight_dtype), bi=bi,
        wh=wh.astype(weight_dtype), bhn=bhn,
        w2=w2.astype(weight_dtype), b2=b2,
        H=H, D=D, A=A, Hx=Hx, Gp=Gp, Ap=Ap,
    )


# ---------------------------------------------------------------------------
# Pure-JAX f32 reference (PyTorch RNNAgent / GRUCell semantics)
# ---------------------------------------------------------------------------
def rnn_agent_reference(x_seq, h0, raw):
    H = raw["fc1_w"].shape[0]

    def step(h, x):
        xh = jax.nn.relu(x @ raw["fc1_w"].T + raw["fc1_b"])
        gi = xh @ raw["gru_w_ih"].T + raw["gru_b_ih"]
        gh = h @ raw["gru_w_hh"].T + raw["gru_b_hh"]
        r = jax.nn.sigmoid(gi[:, :H] + gh[:, :H])
        z = jax.nn.sigmoid(gi[:, H:2 * H] + gh[:, H:2 * H])
        n = jnp.tanh(gi[:, 2 * H:] + r * gh[:, 2 * H:])
        h_new = (1.0 - z) * n + z * h
        q = h_new @ raw["fc2_w"].T + raw["fc2_b"]
        return h_new, q

    h_final, q_seq = jax.lax.scan(step, h0, x_seq)
    return q_seq, h_final


# ---------------------------------------------------------------------------
if __name__ == "__main__":
    input_shape, rnn_hidden_dim, n_actions = 48, 32, 8
    batch, seq_len = 4, 8

    key = jax.random.PRNGKey(0)
    k_params, k_x = jax.random.split(key)
    raw = init_params(k_params, input_shape, rnn_hidden_dim, n_actions)
    kp = pack_params(raw)

    x_seq = jax.random.normal(k_x, (seq_len, batch, input_shape), jnp.float32)
    hidden = jnp.zeros((batch, rnn_hidden_dim), jnp.float32)  # init_hidden()

    # Full rollout: one pallas_call, weights VMEM-resident across all steps.
    q_seq, h_last = rnn_agent_rollout(x_seq, hidden, kp)
    jax.block_until_ready((q_seq, h_last))

    # Single-step API matching RNNAgent.forward().
    q1, h1 = rnn_agent_forward(x_seq[0], hidden, kp)
    jax.block_until_ready((q1, h1))

    # Validate against f32 reference (bf16 weights/activations => loose tol).
    q_ref, h_ref = rnn_agent_reference(x_seq, hidden, raw)
    assert q_seq.shape == (seq_len, batch, n_actions)
    assert h_last.shape == (batch, rnn_hidden_dim)
    assert q1.shape == (batch, n_actions) and h1.shape == (batch, rnn_hidden_dim)
    assert jnp.allclose(q_seq, q_ref, atol=7.5e-2, rtol=7.5e-2), \
        float(jnp.max(jnp.abs(q_seq - q_ref)))
    assert jnp.allclose(h_last, h_ref, atol=7.5e-2, rtol=7.5e-2), \
        float(jnp.max(jnp.abs(h_last - h_ref)))
    assert jnp.allclose(q1, q_ref[0], atol=7.5e-2, rtol=7.5e-2)

    print("KERNEL_OK")
</pallas_src>

<mosaic_0001>
module attributes {stable_mosaic.version = 11 : i64} {
  func.func @rnn_agent_kernel(%arg0: i32, %arg1: i32, %arg2: memref<1x16x48xbf16, #tpu.memory_space<vmem>>, %arg3: memref<16x128xf32, #tpu.memory_space<vmem>>, %arg4: memref<48x128xbf16, #tpu.memory_space<vmem>>, %arg5: memref<1x128xf32, #tpu.memory_space<vmem>>, %arg6: memref<128x128xbf16, #tpu.memory_space<vmem>>, %arg7: memref<1x128xf32, #tpu.memory_space<vmem>>, %arg8: memref<128x128xbf16, #tpu.memory_space<vmem>>, %arg9: memref<1x128xf32, #tpu.memory_space<vmem>>, %arg10: memref<128x128xbf16, #tpu.memory_space<vmem>>, %arg11: memref<1x128xf32, #tpu.memory_space<vmem>>, %arg12: memref<1x16x128xf32, #tpu.memory_space<vmem>>, %arg13: memref<16x128xf32, #tpu.memory_space<vmem>>, %arg14: memref<16x128xf32, #tpu.memory_space<vmem>>) attributes {dimension_semantics = [#tpu.dimension_semantics<parallel>, #tpu.dimension_semantics<arbitrary>], iteration_bounds = array<i64: 1, 8>, scalar_prefetch = 0 : i64, scratch_operands = 1 : i64, tpu.core_type = #tpu.core_type<tc>, window_params = [{transform_indices = @transform_0, window_bounds = array<i64: 1, 16, 48>}, {transform_indices = @transform_1, window_bounds = array<i64: 16, 128>}, {pipeline_mode = #tpu.pipeline_mode<synchronous>, transform_indices = @transform_2, window_bounds = array<i64: 48, 128>}, {pipeline_mode = #tpu.pipeline_mode<synchronous>, transform_indices = @transform_3, window_bounds = array<i64: 1, 128>}, {pipeline_mode = #tpu.pipeline_mode<synchronous>, transform_indices = @transform_4, window_bounds = array<i64: 128, 128>}, {pipeline_mode = #tpu.pipeline_mode<synchronous>, transform_indices = @transform_5, window_bounds = array<i64: 1, 128>}, {pipeline_mode = #tpu.pipeline_mode<synchronous>, transform_indices = @transform_6, window_bounds = array<i64: 128, 128>}, {pipeline_mode = #tpu.pipeline_mode<synchronous>, transform_indices = @transform_7, window_bounds = array<i64: 1, 128>}, {pipeline_mode = #tpu.pipeline_mode<synchronous>, transform_indices = @transform_8, window_bounds = array<i64: 128, 128>}, {pipeline_mode = #tpu.pipeline_mode<synchronous>, transform_indices = @transform_9, window_bounds = array<i64: 1, 128>}, {transform_indices = @transform_10, window_bounds = array<i64: 1, 16, 128>}, {transform_indices = @transform_11, window_bounds = array<i64: 16, 128>}]} {
    %c0_i32 = arith.constant 0 : i32
    %0 = arith.cmpi eq, %arg1, %c0_i32 : i32
    %1 = arith.extui %0 : i1 to i32
    %c0_i32_0 = arith.constant 0 : i32
    %2 = arith.cmpi ne, %1, %c0_i32_0 : i32
    scf.if %2 {
      %c0_34 = arith.constant 0 : index
      %c0_35 = arith.constant 0 : index
      %55 = vector.load %arg3[%c0_34, %c0_35] : memref<16x128xf32, #tpu.memory_space<vmem>>, vector<16x128xf32>
      %c0_36 = arith.constant 0 : index
      %c0_37 = arith.constant 0 : index
      %56 = vector.load %arg14[%c0_36, %c0_37] : memref<16x128xf32, #tpu.memory_space<vmem>>, vector<16x128xf32>
      tpu.vector_store %arg14[%c0_36, %c0_37], %55 {strides = array<i32>} : memref<16x128xf32, #tpu.memory_space<vmem>>, vector<16x128xf32>,
    } else {
    }
    %c0 = arith.constant 0 : index
    %c0_1 = arith.constant 0 : index
    %3 = vector.load %arg14[%c0, %c0_1] : memref<16x128xf32, #tpu.memory_space<vmem>>, vector<16x128xf32>
    %c0_2 = arith.constant 0 : index
    %c0_3 = arith.constant 0 : index
    %c0_4 = arith.constant 0 : index
    %4 = vector.load %arg2[%c0_2, %c0_3, %c0_4] : memref<1x16x48xbf16, #tpu.memory_space<vmem>>, vector<1x16x48xbf16>
    %5 = vector.shape_cast %4 : vector<1x16x48xbf16> to vector<16x48xbf16>
    %c0_5 = arith.constant 0 : index
    %c0_6 = arith.constant 0 : index
    %6 = vector.load %arg4[%c0_5, %c0_6] : memref<48x128xbf16, #tpu.memory_space<vmem>>, vector<48x128xbf16>
    %cst = arith.constant dense<0.000000e+00> : vector<16x128xf32>
    %7 = tpu.matmul %5, %6, %cst {dimension_numbers = #tpu.dot_dimension_numbers<[1], [0], [0], [1], [0, 0, 1, 1], [], []>} : vector<16x48xbf16>, vector<48x128xbf16>, vector<16x128xf32> -> vector<16x128xf32>
    %c0_7 = arith.constant 0 : index
    %c0_8 = arith.constant 0 : index
    %8 = vector.load %arg5[%c0_7, %c0_8] : memref<1x128xf32, #tpu.memory_space<vmem>>, vector<1x128xf32>
    %9 = vector.broadcast %8 : vector<1x128xf32> to vector<16x128xf32>
    %10 = arith.addf %7, %9 : vector<16x128xf32>
    %cst_9 = arith.constant 0.000000e+00 : f32
    %11 = vector.broadcast %cst_9 : f32 to vector<16x128xf32>
    %12 = arith.maximumf %10, %11 : vector<16x128xf32>
    %13 = arith.truncf %12 : vector<16x128xf32> to vector<16x128xbf16>
    %c0_10 = arith.constant 0 : index
    %c0_11 = arith.constant 0 : index
    %14 = vector.load %arg6[%c0_10, %c0_11] : memref<128x128xbf16, #tpu.memory_space<vmem>>, vector<128x128xbf16>
    %cst_12 = arith.constant dense<0.000000e+00> : vector<16x128xf32>
    %15 = tpu.matmul %13, %14, %cst_12 {dimension_numbers = #tpu.dot_dimension_numbers<[1], [0], [0], [1], [0, 0, 1, 1], [], []>} : vector<16x128xbf16>, vector<128x128xbf16>, vector<16x128xf32> -> vector<16x128xf32>
    %c0_13 = arith.constant 0 : index
    %c0_14 = arith.constant 0 : index
    %16 = vector.load %arg7[%c0_13, %c0_14] : memref<1x128xf32, #tpu.memory_space<vmem>>, vector<1x128xf32>
    %17 = vector.broadcast %16 : vector<1x128xf32> to vector<16x128xf32>
    %18 = arith.addf %15, %17 : vector<16x128xf32>
    %19 = arith.truncf %3 : vector<16x128xf32> to vector<16x128xbf16>
    %c0_15 = arith.constant 0 : index
    %c0_16 = arith.constant 0 : index
    %20 = vector.load %arg8[%c0_15, %c0_16] : memref<128x128xbf16, #tpu.memory_space<vmem>>, vector<128x128xbf16>
    %cst_17 = arith.constant dense<0.000000e+00> : vector<16x128xf32>
    %21 = tpu.matmul %19, %20, %cst_17 {dimension_numbers = #tpu.dot_dimension_numbers<[1], [0], [0], [1], [0, 0, 1, 1], [], []>} : vector<16x128xbf16>, vector<128x128xbf16>, vector<16x128xf32> -> vector<16x128xf32>
    %22 = arith.addf %18, %21 : vector<16x128xf32>
    %23 = arith.negf %22 : vector<16x128xf32>
    %24 = math.exp %23 : vector<16x128xf32>
    %cst_18 = arith.constant 1.000000e+00 : f32
    %25 = vector.broadcast %cst_18 : f32 to vector<16x128xf32>
    %26 = arith.addf %25, %24 : vector<16x128xf32>
    %27 = arith.divf %25, %26 : vector<16x128xf32>
    %c96_i32 = arith.constant 96 : i32
    %28 = tpu.dynamic_rotate %27 by %c96_i32 dim 1 : vector<16x128xf32>, i32 -> vector<16x128xf32>
    %c64_i32 = arith.constant 64 : i32
    %29 = tpu.dynamic_rotate %18 by %c64_i32 dim 1 : vector<16x128xf32>, i32 -> vector<16x128xf32>
    %c64_i32_19 = arith.constant 64 : i32
    %30 = tpu.dynamic_rotate %21 by %c64_i32_19 dim 1 : vector<16x128xf32>, i32 -> vector<16x128xf32>
    %c0_20 = arith.constant 0 : index
    %c0_21 = arith.constant 0 : index
    %31 = vector.load %arg9[%c0_20, %c0_21] : memref<1x128xf32, #tpu.memory_space<vmem>>, vector<1x128xf32>
    %32 = vector.broadcast %31 : vector<1x128xf32> to vector<16x128xf32>
    %33 = arith.addf %30, %32 : vector<16x128xf32>
    %34 = arith.mulf %27, %33 : vector<16x128xf32>
    %35 = arith.addf %29, %34 : vector<16x128xf32>
    %36 = math.tanh %35 : vector<16x128xf32>
    %cst_22 = arith.constant 1.000000e+00 : f32
    %37 = vector.broadcast %cst_22 : f32 to vector<16x128xf32>
    %38 = arith.subf %37, %28 : vector<16x128xf32>
    %39 = arith.mulf %38, %36 : vector<16x128xf32>
    %40 = arith.mulf %28, %3 : vector<16x128xf32>
    %41 = arith.addf %39, %40 : vector<16x128xf32>
    %c0_23 = arith.constant 0 : index
    %c0_24 = arith.constant 0 : index
    %42 = vector.load %arg14[%c0_23, %c0_24] : memref<16x128xf32, #tpu.memory_space<vmem>>, vector<16x128xf32>
    tpu.vector_store %arg14[%c0_23, %c0_24], %41 {strides = array<i32>} : memref<16x128xf32, #tpu.memory_space<vmem>>, vector<16x128xf32>,
    %43 = arith.truncf %41 : vector<16x128xf32> to vector<16x128xbf16>
    %c0_25 = arith.constant 0 : index
    %c0_26 = arith.constant 0 : index
    %44 = vector.load %arg10[%c0_25, %c0_26] : memref<128x128xbf16, #tpu.memory_space<vmem>>, vector<128x128xbf16>
    %cst_27 = arith.constant dense<0.000000e+00> : vector<16x128xf32>
    %45 = tpu.matmul %43, %44, %cst_27 {dimension_numbers = #tpu.dot_dimension_numbers<[1], [0], [0], [1], [0, 0, 1, 1], [], []>} : vector<16x128xbf16>, vector<128x128xbf16>, vector<16x128xf32> -> vector<16x128xf32>
    %c0_28 = arith.constant 0 : index
    %c0_29 = arith.constant 0 : index
    %46 = vector.load %arg11[%c0_28, %c0_29] : memref<1x128xf32, #tpu.memory_space<vmem>>, vector<1x128xf32>
    %47 = vector.broadcast %46 : vector<1x128xf32> to vector<16x128xf32>
    %48 = arith.addf %45, %47 : vector<16x128xf32>
    %c0_30 = arith.constant 0 : index
    %c0_31 = arith.constant 0 : index
    %c0_32 = arith.constant 0 : index
    %49 = vector.load %arg12[%c0_30, %c0_31, %c0_32] : memref<1x16x128xf32, #tpu.memory_space<vmem>>, vector<1x16x128xf32>
    %50 = vector.shape_cast %49 : vector<1x16x128xf32> to vector<16x128xf32>
    %51 = vector.shape_cast %48 : vector<16x128xf32> to vector<1x16x128xf32>
    tpu.vector_store %arg12[%c0_30, %c0_31, %c0_32], %51 {strides = array<i32>} : memref<1x16x128xf32, #tpu.memory_space<vmem>>, vector<1x16x128xf32>,
    %c7_i32 = arith.constant 7 : i32
    %52 = arith.cmpi eq, %arg1, %c7_i32 : i32
    %53 = arith.extui %52 : i1 to i32
    %c0_i32_33 = arith.constant 0 : i32
    %54 = arith.cmpi ne, %53, %c0_i32_33 : i32
    scf.if %54 {
      %c0_34 = arith.constant 0 : index
      %c0_35 = arith.constant 0 : index
      %55 = vector.load %arg13[%c0_34, %c0_35] : memref<16x128xf32, #tpu.memory_space<vmem>>, vector<16x128xf32>
      tpu.vector_store %arg13[%c0_34, %c0_35], %41 {strides = array<i32>} : memref<16x128xf32, #tpu.memory_space<vmem>>, vector<16x128xf32>,
    } else {
    }
    return
  }
  func.func @transform_0(%arg0: i32, %arg1: i32) -> (i32, i32, i32) {
    %c0_i32 = arith.constant 0 : i32
    %c0_i32_0 = arith.constant 0 : i32
    return %arg1, %arg0, %c0_i32 : i32, i32, i32
  }
  func.func @transform_1(%arg0: i32, %arg1: i32) -> (i32, i32) {
    %c0_i32 = arith.constant 0 : i32
    %c0_i32_0 = arith.constant 0 : i32
    return %arg0, %c0_i32 : i32, i32
  }
  func.func @transform_2(%arg0: i32, %arg1: i32) -> (i32, i32) {
    %c0_i32 = arith.constant 0 : i32
    %c0_i32_0 = arith.constant 0 : i32
    %c0_i32_1 = arith.constant 0 : i32
    return %c0_i32, %c0_i32_0 : i32, i32
  }
  func.func @transform_3(%arg0: i32, %arg1: i32) -> (i32, i32) {
    %c0_i32 = arith.constant 0 : i32
    %c0_i32_0 = arith.constant 0 : i32
    %c0_i32_1 = arith.constant 0 : i32
    return %c0_i32, %c0_i32_0 : i32, i32
  }
  func.func @transform_4(%arg0: i32, %arg1: i32) -> (i32, i32) {
    %c0_i32 = arith.constant 0 : i32
    %c0_i32_0 = arith.constant 0 : i32
    %c0_i32_1 = arith.constant 0 : i32
    return %c0_i32, %c0_i32_0 : i32, i32
  }
  func.func @transform_5(%arg0: i32, %arg1: i32) -> (i32, i32) {
    %c0_i32 = arith.constant 0 : i32
    %c0_i32_0 = arith.constant 0 : i32
    %c0_i32_1 = arith.constant 0 : i32
    return %c0_i32, %c0_i32_0 : i32, i32
  }
  func.func @transform_6(%arg0: i32, %arg1: i32) -> (i32, i32) {
    %c0_i32 = arith.constant 0 : i32
    %c0_i32_0 = arith.constant 0 : i32
    %c0_i32_1 = arith.constant 0 : i32
    return %c0_i32, %c0_i32_0 : i32, i32
  }
  func.func @transform_7(%arg0: i32, %arg1: i32) -> (i32, i32) {
    %c0_i32 = arith.constant 0 : i32
    %c0_i32_0 = arith.constant 0 : i32
    %c0_i32_1 = arith.constant 0 : i32
    return %c0_i32, %c0_i32_0 : i32, i32
  }
  func.func @transform_8(%arg0: i32, %arg1: i32) -> (i32, i32) {
    %c0_i32 = arith.constant 0 : i32
    %c0_i32_0 = arith.constant 0 : i32
    %c0_i32_1 = arith.constant 0 : i32
    return %c0_i32, %c0_i32_0 : i32, i32
  }
  func.func @transform_9(%arg0: i32, %arg1: i32) -> (i32, i32) {
    %c0_i32 = arith.constant 0 : i32
    %c0_i32_0 = arith.constant 0 : i32
    %c0_i32_1 = arith.constant 0 : i32
    return %c0_i32, %c0_i32_0 : i32, i32
  }
  func.func @transform_10(%arg0: i32, %arg1: i32) -> (i32, i32, i32) {
    %c0_i32 = arith.constant 0 : i32
    %c0_i32_0 = arith.constant 0 : i32
    return %arg1, %arg0, %c0_i32 : i32, i32, i32
  }
  func.func @transform_11(%arg0: i32, %arg1: i32) -> (i32, i32) {
    %c0_i32 = arith.constant 0 : i32
    %c0_i32_0 = arith.constant 0 : i32
    return %arg0, %c0_i32 : i32, i32
  }
}

</mosaic_0001>

<llo_original>
// kernel: tpu_custom_call.1
$region0: #{tpu_custom_call.1}
  #allocation0 [shape = 'u32[]', space=smem, size = 0x4, offset = 0x4, fixed_abs, tag = 'smem constant byte address 0x4 - core index']
  #allocation1 [shape = 'u32[144,128]{1,0:T(1,128)}', space=vmem, size = 0x12000, scoped, tag = 'internal scratch']
  #allocation2 [shape = 'f32[16,128]{1,0:T(8,128)}', space=vmem, size = 0x2000, scoped, tag = 'scratch operand']
  %s0 = inlined_call_operand.hbm [shape: bf16[8,16,48], index: 0, kind: input, shape index: {}]
  %s1 = inlined_call_operand.hbm [shape: f32[16,128], index: 1, kind: input, shape index: {}]
  %s2 = inlined_call_operand.hbm [shape: bf16[48,128], index: 2, kind: input, shape index: {}]
  %s3 = inlined_call_operand.vmem [shape: f32[1,128], index: 3, kind: input, shape index: {}]
  %s4 = inlined_call_operand.hbm [shape: bf16[128,128], index: 4, kind: input, shape index: {}]
  %s5 = inlined_call_operand.vmem [shape: f32[1,128], index: 5, kind: input, shape index: {}]
  %s6 = inlined_call_operand.hbm [shape: bf16[128,128], index: 6, kind: input, shape index: {}]
  %s7 = inlined_call_operand.vmem [shape: f32[1,128], index: 7, kind: input, shape index: {}]
  %s8 = inlined_call_operand.hbm [shape: bf16[128,128], index: 8, kind: input, shape index: {}]
  %s9 = inlined_call_operand.vmem [shape: f32[1,128], index: 9, kind: input, shape index: {}]
  %s10 = inlined_call_operand.hbm [shape: f32[8,16,128], index: 10, kind: output, shape index: {0}]
  %s11 = inlined_call_operand.hbm [shape: f32[16,128], index: 11, kind: output, shape index: {1}]
  %12 = xla_tuple %s10, %s11
  %s13 = sld [smem:[#allocation0]]
  $region113: #{tpu_custom_call.1} parent=0
    _
  %s15 = ssub.s32 1, %s13
  %s16 = scalar_select 0, %s15, %s13
  $region1: #{tpu_custom_call.1} parent=0
    #allocation3 [shape = 'u8[8192]{0}', space=vmem, size = 0x2000, scoped, tag = 'input window, operand 0']
    #allocation4 [shape = 's32[2]{0}', space=sflag, size = 0x8, scoped, tag = 'scoped memory for tpu_custom_call.1']
    #allocation5 [shape = 's32[2]{0}', space=sflag, size = 0x8, scoped, tag = 'scoped memory for tpu_custom_call.1']
    #allocation6 [shape = 'u8[8192]{0}', space=vmem, size = 0x2000, scoped, tag = 'input window, operand 1, single buffered']
    #allocation7 [shape = 's32[1]{0}', space=sflag, size = 0x4, scoped, tag = 'scoped memory for tpu_custom_call.1']
    #allocation8 [shape = 'u8[12288]{0}', space=vmem, size = 0x3000, scoped, tag = 'input window, operand 2, single buffered']
    #allocation9 [shape = 'u8[32768]{0}', space=vmem, size = 0x8000, scoped, tag = 'input window, operand 4, single buffered']
    #allocation10 [shape = 's32[1]{0}', space=sflag, size = 0x4, scoped, tag = 'scoped memory for tpu_custom_call.1']
    #allocation11 [shape = 'u8[32768]{0}', space=vmem, size = 0x8000, scoped, tag = 'input window, operand 6, single buffered']
    #allocation12 [shape = 'u8[32768]{0}', space=vmem, size = 0x8000, scoped, tag = 'input window, operand 8, single buffered']
    #allocation13 [shape = 's32[1]{0}', space=sflag, size = 0x4, scoped, tag = 'scoped memory for tpu_custom_call.1']
    #allocation14 [shape = 'u8[16384]{0}', space=vmem, size = 0x4000, scoped, tag = 'output window, operand 0']
    #allocation15 [shape = 'u8[8192]{0}', space=vmem, size = 0x2000, scoped, tag = 'output window, operand 1, single buffered']
    #allocation16 [shape = 's32[1]{0}', space=sflag, size = 0x4, scoped, tag = 'scoped memory for tpu_custom_call.1']
    %17 = vsyncpa [#allocation4], 0
    %s18 = scalar_lea.sflag [#allocation4], 1
    %19 = vsyncpa %s18, 0
    %20 = vsyncpa [#allocation7], 0
    %21 = vsyncpa [#allocation10], 0
    %22 = vsyncpa [#allocation13], 0
    %23 = vsyncpa [#allocation5], 0
    %s24 = scalar_lea.sflag [#allocation5], 1
    %25 = vsyncpa %s24, 0
    %26 = vsyncpa [#allocation16], 0
    loop: start=0, step=1, limit=10
    $region2: #{tpu_custom_call.1} parent=1 // loop_pre_header
      _
    $region3: #{tpu_custom_call.1} parent=1 // loop_header
      %s28 = sphi 0, %s32
      %p29 = scmp.ge.s32.totalorder %s28, 10
      %s35 = sphi 0, %s47
      %s36 = sphi 0, %s43
      %s37 = sphi 0, %s35
      %s38 = sphi 0, %s36
      %s39 = sphi 0, %s37
      %s40 = sphi 0, %s38
      %s52 = sphi 0, %s54
      %s55 = sphi 0, %s52
      %s56 = sphi 0, %s55
      %s72 = sphi 0, %s56
      %s78 = sphi 0, %s80
      %s81 = sphi 0, %s78
      %s82 = sphi 0, %s81
      %s98 = sphi 0, %s82
      %s102 = sphi 0, %s102
      %s104 = sphi 0, %s102
      %s105 = sphi 0, %s104
      %s119 = sphi 0, %s105
      %s123 = sphi 0, %s123
      %s125 = sphi 0, %s123
      %s126 = sphi 0, %s125
      %s140 = sphi 0, %s126
      %s144 = sphi 0, %s144
      %s146 = sphi 0, %s144
      %s147 = sphi 0, %s146
      %s161 = sphi 0, %s147
      %s165 = sphi 0, %s165
      %s167 = sphi 0, %s165
      %s168 = sphi 0, %s167
      %s182 = sphi 0, %s168
      %s186 = sphi 0, %s186
      %s188 = sphi 0, %s186
      %s189 = sphi 0, %s188
      %s203 = sphi 0, %s189
      %s207 = sphi 0, %s207
      %s209 = sphi 0, %s207
      %s210 = sphi 0, %s209
      %s224 = sphi 0, %s210
      %s228 = sphi 0, %s228
      %s230 = sphi 0, %s228
      %s231 = sphi 0, %s230
      %s245 = sphi 0, %s231
      %s249 = sphi 0, %s249
      %s251 = sphi 0, %s249
      %s252 = sphi 0, %s251
      %s266 = sphi 0, %s252
      %s274 = sphi 0, %s276
      %s277 = sphi 0, %s274
      %s278 = sphi 0, %s277
      %s294 = sphi 0, %s278
      %s300 = sphi 0, %s302
      %s303 = sphi 0, %s300
      %s304 = sphi 0, %s303
      %s320 = sphi 0, %s304
    $region4: #{tpu_custom_call.1} parent=1 // loop_header_branch
      %31 = sbr.rel (%p29) target = $region8
    $region5: #{tpu_custom_call.1} parent=1 // loop_body
      %s33 = ssub.s32 %s28, 1
      %s34 = ssub.s32 %s28, 2
      %s41 = sadd.s32 1, %s36
      %p42 = scmp.ge.s32.totalorder %s41, 8
      %s43 = scalar_select %p42, 0, %s41
      %s44 = sadd.s32 1, %s35
      %s45 = scalar_select %p42, %s44, %s35
      %p46 = scmp.ge.s32.totalorder %s45, 1
      %s47 = scalar_select %p46, 0, %s45
      %s48 = ssub.s32 %s36, %s43
      %s49 = ssub.s32 %s35, %s47
      %s50 = sor.u32 %s48, %s49
      %p51 = scmp.eq.s32.totalorder %s50, 0
      %s53 = sadd.s32 %s52, 1
      %s54 = scalar_select %p51, %s52, %s53
      %p57 = pneg %p51
      %p58 = scmp.eq.s32.totalorder %s28, 7
      %p59 = por %p57, %p58
      %p60 = scmp.ne.s32.totalorder %s52, %s55
      %p61 = scmp.eq.s32.totalorder %s28, 0
      %p62 = por %p60, %p61
      %p63 = scmp.ne.s32.totalorder %s52, %s55
      %p64 = scmp.eq.s32.totalorder %s33, 7
      %p65 = por %p63, %p64
      %p66 = scmp.ne.s32.totalorder %s55, %s56
      %p67 = scmp.eq.s32.totalorder %s33, 0
      %p68 = por %p66, %p67
      %p69 = scmp.ne.s32.totalorder %s55, %s56
      %p70 = scmp.eq.s32.totalorder %s34, 7
      %p71 = por %p69, %p70
      %p73 = scmp.ne.s32.totalorder %s56, %s72
      %p74 = scmp.eq.s32.totalorder %s34, 0
      %p75 = por %p73, %p74
      %s76 = ssub.s32 %s35, %s47
      %p77 = scmp.eq.s32.totalorder %s76, 0
      %s79 = sadd.s32 %s78, 1
      %s80 = scalar_select %p77, %s78, %s79
      %p83 = pneg %p77
      %p84 = scmp.eq.s32.totalorder %s28, 7
      %p85 = por %p83, %p84
      %p86 = scmp.ne.s32.totalorder %s78, %s81
      %p87 = scmp.eq.s32.totalorder %s28, 0
      %p88 = por %p86, %p87
      %p89 = scmp.ne.s32.totalorder %s78, %s81
      %p90 = scmp.eq.s32.totalorder %s33, 7
      %p91 = por %p89, %p90
      %p92 = scmp.ne.s32.totalorder %s81, %s82
      %p93 = scmp.eq.s32.totalorder %s33, 0
      %p94 = por %p92, %p93
      %p95 = scmp.ne.s32.totalorder %s81, %s82
      %p96 = scmp.eq.s32.totalorder %s34, 7
      %p97 = por %p95, %p96
      %p99 = scmp.ne.s32.totalorder %s82, %s98
      %p100 = scmp.eq.s32.totalorder %s34, 0
      %p101 = por %p99, %p100
      %s103 = sadd.s32 %s102, 1
      %p106 = scmp.eq.s32.totalorder %s28, 7
      %p107 = scmp.ne.s32.totalorder %s102, %s104
      %p108 = scmp.eq.s32.totalorder %s28, 0
      %p109 = por %p107, %p108
      %p110 = scmp.ne.s32.totalorder %s102, %s104
      %p111 = scmp.eq.s32.totalorder %s33, 7
      %p112 = por %p110, %p111
      %p113 = scmp.ne.s32.totalorder %s104, %s105
      %p114 = scmp.eq.s32.totalorder %s33, 0
      %p115 = por %p113, %p114
      %p116 = scmp.ne.s32.totalorder %s104, %s105
      %p117 = scmp.eq.s32.totalorder %s34, 7
      %p118 = por %p116, %p117
      %p120 = scmp.ne.s32.totalorder %s105, %s119
      %p121 = scmp.eq.s32.totalorder %s34, 0
      %p122 = por %p120, %p121
      %s124 = sadd.s32 %s123, 1
      %p127 = scmp.eq.s32.totalorder %s28, 7
      %p128 = scmp.ne.s32.totalorder %s123, %s125
      %p129 = scmp.eq.s32.totalorder %s28, 0
      %p130 = por %p128, %p129
      %p131 = scmp.ne.s32.totalorder %s123, %s125
      %p132 = scmp.eq.s32.totalorder %s33, 7
      %p133 = por %p131, %p132
      %p134 = scmp.ne.s32.totalorder %s125, %s126
      %p135 = scmp.eq.s32.totalorder %s33, 0
      %p136 = por %p134, %p135
      %p137 = scmp.ne.s32.totalorder %s125, %s126
      %p138 = scmp.eq.s32.totalorder %s34, 7
      %p139 = por %p137, %p138
      %p141 = scmp.ne.s32.totalorder %s126, %s140
      %p142 = scmp.eq.s32.totalorder %s34, 0
      %p143 = por %p141, %p142
      %s145 = sadd.s32 %s144, 1
      %p148 = scmp.eq.s32.totalorder %s28, 7
      %p149 = scmp.ne.s32.totalorder %s144, %s146
      %p150 = scmp.eq.s32.totalorder %s28, 0
      %p151 = por %p149, %p150
      %p152 = scmp.ne.s32.totalorder %s144, %s146
      %p153 = scmp.eq.s32.totalorder %s33, 7
      %p154 = por %p152, %p153
      %p155 = scmp.ne.s32.totalorder %s146, %s147
      %p156 = scmp.eq.s32.totalorder %s33, 0
      %p157 = por %p155, %p156
      %p158 = scmp.ne.s32.totalorder %s146, %s147
      %p159 = scmp.eq.s32.totalorder %s34, 7
      %p160 = por %p158, %p159
      %p162 = scmp.ne.s32.totalorder %s147, %s161
      %p163 = scmp.eq.s32.totalorder %s34, 0
      %p164 = por %p162, %p163
      %s166 = sadd.s32 %s165, 1
      %p169 = scmp.eq.s32.totalorder %s28, 7
      %p170 = scmp.ne.s32.totalorder %s165, %s167
      %p171 = scmp.eq.s32.totalorder %s28, 0
      %p172 = por %p170, %p171
      %p173 = scmp.ne.s32.totalorder %s165, %s167
      %p174 = scmp.eq.s32.totalorder %s33, 7
      %p175 = por %p173, %p174
      %p176 = scmp.ne.s32.totalorder %s167, %s168
      %p177 = scmp.eq.s32.totalorder %s33, 0
      %p178 = por %p176, %p177
      %p179 = scmp.ne.s32.totalorder %s167, %s168
      %p180 = scmp.eq.s32.totalorder %s34, 7
      %p181 = por %p179, %p180
      %p183 = scmp.ne.s32.totalorder %s168, %s182
      %p184 = scmp.eq.s32.totalorder %s34, 0
      %p185 = por %p183, %p184
      %s187 = sadd.s32 %s186, 1
      %p190 = scmp.eq.s32.totalorder %s28, 7
      %p191 = scmp.ne.s32.totalorder %s186, %s188
      %p192 = scmp.eq.s32.totalorder %s28, 0
      %p193 = por %p191, %p192
      %p194 = scmp.ne.s32.totalorder %s186, %s188
      %p195 = scmp.eq.s32.totalorder %s33, 7
      %p196 = por %p194, %p195
      %p197 = scmp.ne.s32.totalorder %s188, %s189
      %p198 = scmp.eq.s32.totalorder %s33, 0
      %p199 = por %p197, %p198
      %p200 = scmp.ne.s32.totalorder %s188, %s189
      %p201 = scmp.eq.s32.totalorder %s34, 7
      %p202 = por %p200, %p201
      %p204 = scmp.ne.s32.totalorder %s189, %s203
      %p205 = scmp.eq.s32.totalorder %s34, 0
      %p206 = por %p204, %p205
      %s208 = sadd.s32 %s207, 1
      %p211 = scmp.eq.s32.totalorder %s28, 7
      %p212 = scmp.ne.s32.totalorder %s207, %s209
      %p213 = scmp.eq.s32.totalorder %s28, 0
      %p214 = por %p212, %p213
      %p215 = scmp.ne.s32.totalorder %s207, %s209
      %p216 = scmp.eq.s32.totalorder %s33, 7
      %p217 = por %p215, %p216
      %p218 = scmp.ne.s32.totalorder %s209, %s210
      %p219 = scmp.eq.s32.totalorder %s33, 0
      %p220 = por %p218, %p219
      %p221 = scmp.ne.s32.totalorder %s209, %s210
      %p222 = scmp.eq.s32.totalorder %s34, 7
      %p223 = por %p221, %p222
      %p225 = scmp.ne.s32.totalorder %s210, %s224
      %p226 = scmp.eq.s32.totalorder %s34, 0
      %p227 = por %p225, %p226
      %s229 = sadd.s32 %s228, 1
      %p232 = scmp.eq.s32.totalorder %s28, 7
      %p233 = scmp.ne.s32.totalorder %s228, %s230
      %p234 = scmp.eq.s32.totalorder %s28, 0
      %p235 = por %p233, %p234
      %p236 = scmp.ne.s32.totalorder %s228, %s230
      %p237 = scmp.eq.s32.totalorder %s33, 7
      %p238 = por %p236, %p237
      %p239 = scmp.ne.s32.totalorder %s230, %s231
      %p240 = scmp.eq.s32.totalorder %s33, 0
      %p241 = por %p239, %p240
      %p242 = scmp.ne.s32.totalorder %s230, %s231
      %p243 = scmp.eq.s32.totalorder %s34, 7
      %p244 = por %p242, %p243
      %p246 = scmp.ne.s32.totalorder %s231, %s245
      %p247 = scmp.eq.s32.totalorder %s34, 0
      %p248 = por %p246, %p247
      %s250 = sadd.s32 %s249, 1
      %p253 = scmp.eq.s32.totalorder %s28, 7
      %p254 = scmp.ne.s32.totalorder %s249, %s251
      %p255 = scmp.eq.s32.totalorder %s28, 0
      %p256 = por %p254, %p255
      %p257 = scmp.ne.s32.totalorder %s249, %s251
      %p258 = scmp.eq.s32.totalorder %s33, 7
      %p259 = por %p257, %p258
      %p260 = scmp.ne.s32.totalorder %s251, %s252
      %p261 = scmp.eq.s32.totalorder %s33, 0
      %p262 = por %p260, %p261
      %p263 = scmp.ne.s32.totalorder %s251, %s252
      %p264 = scmp.eq.s32.totalorder %s34, 7
      %p265 = por %p263, %p264
      %p267 = scmp.ne.s32.totalorder %s252, %s266
      %p268 = scmp.eq.s32.totalorder %s34, 0
      %p269 = por %p267, %p268
      %s270 = ssub.s32 %s36, %s43
      %s271 = ssub.s32 %s35, %s47
      %s272 = sor.u32 %s270, %s271
      %p273 = scmp.eq.s32.totalorder %s272, 0
      %s275 = sadd.s32 %s274, 1
      %s276 = scalar_select %p273, %s274, %s275
      %p279 = pneg %p273
      %p280 = scmp.eq.s32.totalorder %s28, 7
      %p281 = por %p279, %p280
      %p282 = scmp.ne.s32.totalorder %s274, %s277
      %p283 = scmp.eq.s32.totalorder %s28, 0
      %p284 = por %p282, %p283
      %p285 = scmp.ne.s32.totalorder %s274, %s277
      %p286 = scmp.eq.s32.totalorder %s33, 7
      %p287 = por %p285, %p286
      %p288 = scmp.ne.s32.totalorder %s277, %s278
      %p289 = scmp.eq.s32.totalorder %s33, 0
      %p290 = por %p288, %p289
      %p291 = scmp.ne.s32.totalorder %s277, %s278
      %p292 = scmp.eq.s32.totalorder %s34, 7
      %p293 = por %p291, %p292
      %p295 = scmp.ne.s32.totalorder %s278, %s294
      %p296 = scmp.eq.s32.totalorder %s34, 0
      %p297 = por %p295, %p296
      %s298 = ssub.s32 %s35, %s47
      %p299 = scmp.eq.s32.totalorder %s298, 0
      %s301 = sadd.s32 %s300, 1
      %s302 = scalar_select %p299, %s300, %s301
      %p305 = pneg %p299
      %p306 = scmp.eq.s32.totalorder %s28, 7
      %p307 = por %p305, %p306
      %p308 = scmp.ne.s32.totalorder %s300, %s303
      %p309 = scmp.eq.s32.totalorder %s28, 0
      %p310 = por %p308, %p309
      %p311 = scmp.ne.s32.totalorder %s300, %s303
      %p312 = scmp.eq.s32.totalorder %s33, 7
      %p313 = por %p311, %p312
      %p314 = scmp.ne.s32.totalorder %s303, %s304
      %p315 = scmp.eq.s32.totalorder %s33, 0
      %p316 = por %p314, %p315
      %p317 = scmp.ne.s32.totalorder %s303, %s304
      %p318 = scmp.eq.s32.totalorder %s34, 7
      %p319 = por %p317, %p318
      %p321 = scmp.ne.s32.totalorder %s304, %s320
      %p322 = scmp.eq.s32.totalorder %s34, 0
      %p323 = por %p321, %p322
      %p324 = scmp.le.s32.totalorder 1, %s28
      %p325 = scmp.lt.s32.totalorder %s28, 9
      %p326 = pnand %p324, %p325
      %p327 = pneg %p326
      // Predicated region
      $region9: #{tpu_custom_call.1} parent=5 // pred_check
        _
      $region10: #{tpu_custom_call.1} parent=5 // pred_check_branch
        %329 = sbr.rel (%p326) target = $region12
      $region11: #{tpu_custom_call.1} parent=5 // pred_region
        %s330 = ssub.s32 %s28, 1
        // Predicated region
        $region13: #{tpu_custom_call.1} parent=11 // pred_check
          %p331 = pneg %p94
        $region14: #{tpu_custom_call.1} parent=11 // pred_check_branch
          %333 = sbr.rel (%p331) target = $region16
        $region15: #{tpu_custom_call.1} parent=11 // pred_region
          %s334 = smul.u32 2, %s37
          %s336 = ssub.s32 256, 256
          %337 = vsyncadd [#allocation7], %s336
          %s338 = smul.addr %s334, 128
          %s339 = scalar_lea.hbm %s1, %s338
          %s340 = sshll.u32 [#allocation6], 4
          %s341 = int_to_ptr.vmem [resolvable:$true] %s340
          %346 = dma.hbm_to_vmem [thread:$0]  %s339, 256, %s341, [#allocation7], 128, 128, 8
        $region16: #{tpu_custom_call.1} parent=11 // pred_fallthru
          _
        // Predicated region
        $region17: #{tpu_custom_call.1} parent=11 // pred_check
          %p347 = pneg %p115
        $region18: #{tpu_custom_call.1} parent=11 // pred_check_branch
          %349 = sbr.rel (%p347) target = $region20
        $region19: #{tpu_custom_call.1} parent=11 // pred_region
          %s351 = ssub.s32 384, 384
          %352 = vsyncadd [#allocation7], %s351
          %s353 = sshll.u32 [#allocation8], 4
          %s354 = int_to_ptr.vmem [resolvable:$true] %s353
          %359 = dma.hbm_to_vmem [thread:$0]  %s2, 384, %s354, [#allocation7], 64, 64, 4
        $region20: #{tpu_custom_call.1} parent=11 // pred_fallthru
          _
        // Predicated region
        $region21: #{tpu_custom_call.1} parent=11 // pred_check
          %p360 = pneg %p136
        $region22: #{tpu_custom_call.1} parent=11 // pred_check_branch
          %362 = sbr.rel (%p360) target = $region24
        $region23: #{tpu_custom_call.1} parent=11 // pred_region
          _
        $region24: #{tpu_custom_call.1} parent=11 // pred_fallthru
          _
        // Predicated region
        $region25: #{tpu_custom_call.1} parent=11 // pred_check
          %p363 = pneg %p157
        $region26: #{tpu_custom_call.1} parent=11 // pred_check_branch
          %365 = sbr.rel (%p363) target = $region28
        $region27: #{tpu_custom_call.1} parent=11 // pred_region
          %s367 = ssub.s32 1024, 1024
          %368 = vsyncadd [#allocation10], %s367
          %s369 = sshll.u32 [#allocation9], 4
          %s370 = int_to_ptr.vmem [resolvable:$true] %s369
          %375 = dma.hbm_to_vmem [thread:$0]  %s4, 1024, %s370, [#allocation10], 64, 64, 4
        $region28: #{tpu_custom_call.1} parent=11 // pred_fallthru
          _
        // Predicated region
        $region29: #{tpu_custom_call.1} parent=11 // pred_check
          %p376 = pneg %p178
        $region30: #{tpu_custom_call.1} parent=11 // pred_check_branch
          %378 = sbr.rel (%p376) target = $region32
        $region31: #{tpu_custom_call.1} parent=11 // pred_region
          _
        $region32: #{tpu_custom_call.1} parent=11 // pred_fallthru
          _
        // Predicated region
        $region33: #{tpu_custom_call.1} parent=11 // pred_check
          %p379 = pneg %p199
        $region34: #{tpu_custom_call.1} parent=11 // pred_check_branch
          %381 = sbr.rel (%p379) target = $region36
        $region35: #{tpu_custom_call.1} parent=11 // pred_region
          %s383 = ssub.s32 1024, 1024
          %384 = vsyncadd [#allocation10], %s383
          %s385 = sshll.u32 [#allocation11], 4
          %s386 = int_to_ptr.vmem [resolvable:$true] %s385
          %391 = dma.hbm_to_vmem [thread:$0]  %s6, 1024, %s386, [#allocation10], 64, 64, 4
        $region36: #{tpu_custom_call.1} parent=11 // pred_fallthru
          _
        // Predicated region
        $region37: #{tpu_custom_call.1} parent=11 // pred_check
          %p392 = pneg %p220
        $region38: #{tpu_custom_call.1} parent=11 // pred_check_branch
          %394 = sbr.rel (%p392) target = $region40
        $region39: #{tpu_custom_call.1} parent=11 // pred_region
          _
        $region40: #{tpu_custom_call.1} parent=11 // pred_fallthru
          _
        // Predicated region
        $region41: #{tpu_custom_call.1} parent=11 // pred_check
          %p395 = pneg %p241
        $region42: #{tpu_custom_call.1} parent=11 // pred_check_branch
          %397 = sbr.rel (%p395) target = $region44
        $region43: #{tpu_custom_call.1} parent=11 // pred_region
          %s399 = ssub.s32 1024, 1024
          %400 = vsyncadd [#allocation13], %s399
          %s401 = sshll.u32 [#allocation12], 4
          %s402 = int_to_ptr.vmem [resolvable:$true] %s401
          %407 = dma.hbm_to_vmem [thread:$0]  %s8, 1024, %s402, [#allocation13], 64, 64, 4
        $region44: #{tpu_custom_call.1} parent=11 // pred_fallthru
          _
        // Predicated region
        $region45: #{tpu_custom_call.1} parent=11 // pred_check
          %p408 = pneg %p262
        $region46: #{tpu_custom_call.1} parent=11 // pred_check_branch
          %410 = sbr.rel (%p408) target = $region48
        $region47: #{tpu_custom_call.1} parent=11 // pred_region
          _
        $region48: #{tpu_custom_call.1} parent=11 // pred_fallthru
          _
      $region12: #{tpu_custom_call.1} parent=5 // pred_fallthru
        _
      %p411 = scmp.lt.s32.totalorder %s28, 8
      // Predicated region
      $region49: #{tpu_custom_call.1} parent=5 // pred_check
        %p412 = pneg %p411
      $region50: #{tpu_custom_call.1} parent=5 // pred_check_branch
        %414 = sbr.rel (%p412) target = $region52
      $region51: #{tpu_custom_call.1} parent=5 // pred_region
        // Predicated region
        $region53: #{tpu_custom_call.1} parent=51 // pred_check
          %p415 = pneg %p62
        $region54: #{tpu_custom_call.1} parent=51 // pred_check_branch
          %417 = sbr.rel (%p415) target = $region56
        $region55: #{tpu_custom_call.1} parent=51 // pred_region
          %s418 = sand.u32 %s52, 1
          %s419 = scalar_lea.sflag [#allocation4], %s418
          %s420 = sand.u32 %s52, 1
          %s421 = smul.addr %s420, 8
          %s422 = scalar_lea.vmem [#allocation3], %s421
          %s423 = smul.u32 2, %s35
          %s425 = ssub.s32 128, 128
          %426 = vsyncadd %s419, %s425
          %s427 = smul.addr %s36, 2
          %s428 = sadd.s32 %s423, %s427
          %s429 = smul.addr %s428, 64
          %s430 = scalar_lea.hbm %s0, %s429
          %s431 = sshll.u32 %s422, 4
          %s432 = int_to_ptr.vmem [resolvable:$true] %s431
          %437 = dma.hbm_to_vmem [thread:$0]  %s430, 128, %s432, %s419, 64, 64, 4
        $region56: #{tpu_custom_call.1} parent=51 // pred_fallthru
          _
      $region52: #{tpu_custom_call.1} parent=5 // pred_fallthru
        _
      %p438 = scmp.le.s32.totalorder 1, %s28
      %p439 = scmp.lt.s32.totalorder %s28, 9
      %p440 = pnand %p438, %p439
      %p441 = pneg %p440
      // Predicated region
      $region57: #{tpu_custom_call.1} parent=5 // pred_check
        _
      $region58: #{tpu_custom_call.1} parent=5 // pred_check_branch
        %443 = sbr.rel (%p440) target = $region60
      $region59: #{tpu_custom_call.1} parent=5 // pred_region
        %s444 = ssub.s32 %s28, 1
        %s445 = sand.u32 %s55, 1
        %s446 = scalar_lea.sflag [#allocation4], %s445
        %s447 = sand.u32 %s55, 1
        %s448 = smul.addr %s447, 8
        %s449 = scalar_lea.vmem [#allocation3], %s448
        // Predicated region
        $region61: #{tpu_custom_call.1} parent=59 // pred_check
          %p450 = pneg %p68
        $region62: #{tpu_custom_call.1} parent=59 // pred_check_branch
          %452 = sbr.rel (%p450) target = $region64
        $region63: #{tpu_custom_call.1} parent=59 // pred_region
          %453 = dma.done %s446, 128
        $region64: #{tpu_custom_call.1} parent=59 // pred_fallthru
          _
        // Predicated region
        $region65: #{tpu_custom_call.1} parent=59 // pred_check
          %p454 = pneg %p94
        $region66: #{tpu_custom_call.1} parent=59 // pred_check_branch
          %456 = sbr.rel (%p454) target = $region68
        $region67: #{tpu_custom_call.1} parent=59 // pred_region
          %457 = dma.done [#allocation7], 256
        $region68: #{tpu_custom_call.1} parent=59 // pred_fallthru
          _
        // Predicated region
        $region69: #{tpu_custom_call.1} parent=59 // pred_check
          %p458 = pneg %p115
        $region70: #{tpu_custom_call.1} parent=59 // pred_check_branch
          %460 = sbr.rel (%p458) target = $region72
        $region71: #{tpu_custom_call.1} parent=59 // pred_region
          %461 = dma.done [#allocation7], 384
        $region72: #{tpu_custom_call.1} parent=59 // pred_fallthru
          _
        // Predicated region
        $region73: #{tpu_custom_call.1} parent=59 // pred_check
          %p462 = pneg %p157
        $region74: #{tpu_custom_call.1} parent=59 // pred_check_branch
          %464 = sbr.rel (%p462) target = $region76
        $region75: #{tpu_custom_call.1} parent=59 // pred_region
          %465 = dma.done [#allocation10], 1024
        $region76: #{tpu_custom_call.1} parent=59 // pred_fallthru
          _
        // Predicated region
        $region77: #{tpu_custom_call.1} parent=59 // pred_check
          %p466 = pneg %p199
        $region78: #{tpu_custom_call.1} parent=59 // pred_check_branch
          %468 = sbr.rel (%p466) target = $region80
        $region79: #{tpu_custom_call.1} parent=59 // pred_region
          %469 = dma.done [#allocation10], 1024
        $region80: #{tpu_custom_call.1} parent=59 // pred_fallthru
          _
        // Predicated region
        $region81: #{tpu_custom_call.1} parent=59 // pred_check
          %p470 = pneg %p241
        $region82: #{tpu_custom_call.1} parent=59 // pred_check_branch
          %472 = sbr.rel (%p470) target = $region84
        $region83: #{tpu_custom_call.1} parent=59 // pred_region
          %473 = dma.done [#allocation13], 1024
        $region84: #{tpu_custom_call.1} parent=59 // pred_fallthru
          _
        %s474 = sand.u32 %s55, 1
        %s475 = scalar_lea.sflag [#allocation4], %s474
        %s476 = sand.u32 %s55, 1
        %s477 = smul.addr %s476, 8
        %s478 = scalar_lea.vmem [#allocation3], %s477
        %p479 = pneg %p68
        %p480 = pneg %p65
        %p481 = pneg %p94
        %p482 = pneg %p91
        %p483 = pneg %p115
        %p484 = pneg %p112
        %p485 = pneg %p136
        %p486 = pneg %p133
        %p487 = pneg %p157
        %p488 = pneg %p154
        %p489 = pneg %p178
        %p490 = pneg %p175
        %p491 = pneg %p199
        %p492 = pneg %p196
        %p493 = pneg %p220
        %p494 = pneg %p217
        %p495 = pneg %p241
        %p496 = pneg %p238
        %p497 = pneg %p262
        %p498 = pneg %p259
        %p499 = pneg %p290
        %p500 = pneg %p287
        %s501 = sand.u32 %s277, 1
        %s502 = scalar_lea.sflag [#allocation5], %s501
        %s503 = sand.u32 %s277, 1
        %s504 = smul.addr %s503, 16
        %s505 = scalar_lea.vmem [#allocation14], %s504
        %p506 = pneg %p316
        %p507 = pneg %p313
        %s508 = smul.u32 2, %s37
        %s509 = smul.u32 2, %s37
        %s510 = smul.u32 2, %s37
        %s511 = smul.u32 2, %s37
        %p513 = scmp.eq.s32.totalorder %s38, 0
        // Predicated region
        $region85: #{tpu_custom_call.1} parent=59 // pred_check
          %p514 = pneg %p513
        $region86: #{tpu_custom_call.1} parent=59 // pred_check_branch
          %516 = sbr.rel (%p514) target = $region88
        $region87: #{tpu_custom_call.1} parent=59 // pred_region
          %v517 = vld [vmem:[#allocation6] sm:$0xff]
          %v518 = vld [vmem:[#allocation6 + $0x8] sm:$0xff]
          %519 = vst [vmem:[#allocation2] sm:$0xff] %v517
          %520 = vst [vmem:[#allocation2 + $0x8] sm:$0xff] %v518
        $region88: #{tpu_custom_call.1} parent=59 // pred_fallthru
          _
        %v521 = vld [vmem:[#allocation2] sm:$0xff]
        %v522 = vld [vmem:[#allocation2 + $0x8] sm:$0xff]
        %v523 = vld [vmem:[%s449] sm:$0xf]
        %v524 = vld [vmem:[%s449 + $0x4] sm:$0xf]
        %v525 = vld [vmem:[#allocation8] sm:$0xf]
        %v526 = vld [vmem:[#allocation8 + $0x4] sm:$0xf]
        %v527 = vld [vmem:[#allocation8 + $0x8] sm:$0xf]
        %v528 = vld [vmem:[#allocation8 + $0xc] sm:$0xf]
        %v529 = vld [vmem:[#allocation8 + $0x10] sm:$0xf]
        %v530 = vld [vmem:[#allocation8 + $0x14] sm:$0xf]
        %v531 = vld [vmem:[%s3] sm:$0x1]
        %v533 = vlaneseq
        %v534 = vshrl.u32 %v533, 7
        %v535 = vsub.s32 0, %v534
        %v536 = vrot.slane %v531, %v535
        %v540 = vunpack.c.l.b16 %v523
        %v541 = vunpack.c.l.b16 %v524
        %v542 = vpack.c.b16 %v541, %v540
        %v549 = vunpack.c.l.b16 %v525
        %v550 = vunpack.c.l.b16 %v526
        %v551 = vunpack.c.l.b16 %v527
        %v552 = vunpack.c.l.b16 %v528
        %v553 = vunpack.c.l.b16 %v529
        %v554 = vunpack.c.l.b16 %v530
        %v555 = vpack.c.b16 %v550, %v549
        %v556 = vpack.c.b16 %v552, %v551
        %v557 = vpack.c.b16 %v554, %v553
        %vm561 = vcmask 392192
        %v563 = vsel %vm561, %v542, 0
        %565 = vmatprep.subr.bf16.mxu0 0
        %566 = vmatpush1.bf16.msra.mxu0 %v555
        %567 = vmatprep.subr.bf16.mxu0 0
        %568 = vmatpush1.bf16.msra.mxu0 %v556
        %569 = vmatprep.subr.bf16.mxu0 0
        %570 = vmatpush1.bf16.msra.mxu0 %v557
        %571 = vmatprep.subr.bf16.mxu0 0
        %572 = vmatpush1.bf16.msra.mxu0 0
        %573 = vmatprep.subr.bf16.mxu0 0
        %574 = vmatpush1.bf16.msra.mxu0 0
        %575 = vmatprep.subr.bf16.mxu0 0
        %576 = vmatpush1.bf16.msra.mxu0 0
        %577 = vmatprep.subr.bf16.mxu0 0
        %578 = vmatpush1.bf16.msra.mxu0 0
        %579 = vmatprep.subr.bf16.mxu0 0
        %580 = vmatpush1.bf16.msra.mxu0 0
        %581 = vmatprep.subr.bf16.mxu0 0
        %582 = vmatpush1.bf16.msra.mxu0 0
        %583 = vmatprep.subr.bf16.mxu0 0
        %584 = vmatpush1.bf16.msra.mxu0 0
        %585 = vmatprep.subr.bf16.mxu0 0
        %586 = vmatpush1.bf16.msra.mxu0 0
        %587 = vmatprep.subr.bf16.mxu0 0
        %588 = vmatpush1.bf16.msra.mxu0 0
        %589 = vmatprep.subr.bf16.mxu0 0
        %590 = vmatpush1.bf16.msra.mxu0 0
        %591 = vmatprep.subr.bf16.mxu0 0
        %592 = vmatpush1.bf16.msra.mxu0 0
        %593 = vmatprep.subr.bf16.mxu0 0
        %594 = vmatpush1.bf16.msra.mxu0 0
        %595 = vmatprep.subr.bf16.mxu0 0
        %596 = vmatpush1.bf16.msra.mxu0 0
        %597 = vmatprep.mubr.bf16.mxu0 0
        %598 = vmatmul.mubr.bf16.gmra.mrb[0].mxu0 %v563
        %v599 = vpop.f32.mrb[0].mxu0
        %v600 = vadd.f32 %v536, %v599
        %v601 = vpop.f32.mrb[0].mxu0
        %v602 = vpop.f32.mrb[0].mxu0
        %v603 = vadd.f32 %v536, %v602
        %v604 = vpop.f32.mrb[0].mxu0
        %605 = vdwg.mxu0
        %v606 = vmax.f32 %v600, 0.0
        %v607 = vmax.f32 %v603, 0.0
        %v608 = vpack.c.bf16 %v607, %v606
        %v609 = vld [vmem:[#allocation9] sm:$0xf]
        %v610 = vld [vmem:[#allocation9 + $0x4] sm:$0xf]
        %v611 = vld [vmem:[#allocation9 + $0x8] sm:$0xf]
        %v612 = vld [vmem:[#allocation9 + $0xc] sm:$0xf]
        %v613 = vld [vmem:[#allocation9 + $0x10] sm:$0xf]
        %v614 = vld [vmem:[#allocation9 + $0x14] sm:$0xf]
        %v615 = vld [vmem:[#allocation9 + $0x18] sm:$0xf]
        %v616 = vld [vmem:[#allocation9 + $0x1c] sm:$0xf]
        %v617 = vld [vmem:[#allocation9 + $0x20] sm:$0xf]
        %v618 = vld [vmem:[#allocation9 + $0x24] sm:$0xf]
        %v619 = vld [vmem:[#allocation9 + $0x28] sm:$0xf]
        %v620 = vld [vmem:[#allocation9 + $0x2c] sm:$0xf]
        %v621 = vld [vmem:[#allocation9 + $0x30] sm:$0xf]
        %v622 = vld [vmem:[#allocation9 + $0x34] sm:$0xf]
        %v623 = vld [vmem:[#allocation9 + $0x38] sm:$0xf]
        %v624 = vld [vmem:[#allocation9 + $0x3c] sm:$0xf]
        %v625 = vld [vmem:[%s5] sm:$0x1]
        %v627 = vlaneseq
        %v628 = vshrl.u32 %v627, 7
        %v629 = vsub.s32 0, %v628
        %v630 = vrot.slane %v625, %v629
        %v648 = vunpack.c.l.b16 %v609
        %v649 = vunpack.c.l.b16 %v610
        %v650 = vunpack.c.l.b16 %v611
        %v651 = vunpack.c.l.b16 %v612
        %v652 = vunpack.c.l.b16 %v613
        %v653 = vunpack.c.l.b16 %v614
        %v654 = vunpack.c.l.b16 %v615
        %v655 = vunpack.c.l.b16 %v616
        %v656 = vunpack.c.l.b16 %v617
        %v657 = vunpack.c.l.b16 %v618
        %v658 = vunpack.c.l.b16 %v619
        %v659 = vunpack.c.l.b16 %v620
        %v660 = vunpack.c.l.b16 %v621
        %v661 = vunpack.c.l.b16 %v622
        %v662 = vunpack.c.l.b16 %v623
        %v663 = vunpack.c.l.b16 %v624
        %v664 = vpack.c.b16 %v649, %v648
        %v665 = vpack.c.b16 %v651, %v650
        %v666 = vpack.c.b16 %v653, %v652
        %v667 = vpack.c.b16 %v655, %v654
        %v668 = vpack.c.b16 %v657, %v656
        %v669 = vpack.c.b16 %v659, %v658
        %v670 = vpack.c.b16 %v661, %v660
        %v671 = vpack.c.b16 %v663, %v662
        %680 = vmatprep.subr.bf16.mxu0 0
        %681 = vmatpush1.bf16.msra.mxu0 %v664
        %682 = vmatprep.subr.bf16.mxu0 0
        %683 = vmatpush1.bf16.msra.mxu0 %v665
        %684 = vmatprep.subr.bf16.mxu0 0
        %685 = vmatpush1.bf16.msra.mxu0 %v666
        %686 = vmatprep.subr.bf16.mxu0 0
        %687 = vmatpush1.bf16.msra.mxu0 %v667
        %688 = vmatprep.subr.bf16.mxu0 0
        %689 = vmatpush1.bf16.msra.mxu0 %v668
        %690 = vmatprep.subr.bf16.mxu0 0
        %691 = vmatpush1.bf16.msra.mxu0 %v669
        %692 = vmatprep.subr.bf16.mxu0 0
        %693 = vmatpush1.bf16.msra.mxu0 %v670
        %694 = vmatprep.subr.bf16.mxu0 0
        %695 = vmatpush1.bf16.msra.mxu0 %v671
        %696 = vmatprep.subr.bf16.mxu0 0
        %697 = vmatpush1.bf16.msra.mxu0 0
        %698 = vmatprep.subr.bf16.mxu0 0
        %699 = vmatpush1.bf16.msra.mxu0 0
        %700 = vmatprep.subr.bf16.mxu0 0
        %701 = vmatpush1.bf16.msra.mxu0 0
        %702 = vmatprep.subr.bf16.mxu0 0
        %703 = vmatpush1.bf16.msra.mxu0 0
        %704 = vmatprep.subr.bf16.mxu0 0
        %705 = vmatpush1.bf16.msra.mxu0 0
        %706 = vmatprep.subr.bf16.mxu0 0
        %707 = vmatpush1.bf16.msra.mxu0 0
        %708 = vmatprep.subr.bf16.mxu0 0
        %709 = vmatpush1.bf16.msra.mxu0 0
        %710 = vmatprep.subr.bf16.mxu0 0
        %711 = vmatpush1.bf16.msra.mxu0 0
        %712 = vmatprep.mubr.bf16.mxu0 0
        %713 = vmatmul.mubr.bf16.gmra.mrb[0].mxu0 %v608
        %v714 = vpop.f32.mrb[0].mxu0
        %v715 = vadd.f32 %v630, %v714
        %v716 = vpop.f32.mrb[0].mxu0
        %v717 = vpop.f32.mrb[0].mxu0
        %v718 = vadd.f32 %v630, %v717
        %v719 = vpop.f32.mrb[0].mxu0
        %720 = vdwg.mxu0
        %v721 = vpack.c.bf16 %v522, %v521
        %v722 = vld [vmem:[#allocation11] sm:$0xf]
        %v723 = vld [vmem:[#allocation11 + $0x4] sm:$0xf]
        %v724 = vld [vmem:[#allocation11 + $0x8] sm:$0xf]
        %v725 = vld [vmem:[#allocation11 + $0xc] sm:$0xf]
        %v726 = vld [vmem:[#allocation11 + $0x10] sm:$0xf]
        %v727 = vld [vmem:[#allocation11 + $0x14] sm:$0xf]
        %v728 = vld [vmem:[#allocation11 + $0x18] sm:$0xf]
        %v729 = vld [vmem:[#allocation11 + $0x1c] sm:$0xf]
        %v730 = vld [vmem:[#allocation11 + $0x20] sm:$0xf]
        %v731 = vld [vmem:[#allocation11 + $0x24] sm:$0xf]
        %v732 = vld [vmem:[#allocation11 + $0x28] sm:$0xf]
        %v733 = vld [vmem:[#allocation11 + $0x2c] sm:$0xf]
        %v734 = vld [vmem:[#allocation11 + $0x30] sm:$0xf]
        %v735 = vld [vmem:[#allocation11 + $0x34] sm:$0xf]
        %v736 = vld [vmem:[#allocation11 + $0x38] sm:$0xf]
        %v737 = vld [vmem:[#allocation11 + $0x3c] sm:$0xf]
        %v754 = vunpack.c.l.b16 %v722
        %v755 = vunpack.c.l.b16 %v723
        %v756 = vunpack.c.l.b16 %v724
        %v757 = vunpack.c.l.b16 %v725
        %v758 = vunpack.c.l.b16 %v726
        %v759 = vunpack.c.l.b16 %v727
        %v760 = vunpack.c.l.b16 %v728
        %v761 = vunpack.c.l.b16 %v729
        %v762 = vunpack.c.l.b16 %v730
        %v763 = vunpack.c.l.b16 %v731
        %v764 = vunpack.c.l.b16 %v732
        %v765 = vunpack.c.l.b16 %v733
        %v766 = vunpack.c.l.b16 %v734
        %v767 = vunpack.c.l.b16 %v735
        %v768 = vunpack.c.l.b16 %v736
        %v769 = vunpack.c.l.b16 %v737
        %v770 = vpack.c.b16 %v755, %v754
        %v771 = vpack.c.b16 %v757, %v756
        %v772 = vpack.c.b16 %v759, %v758
        %v773 = vpack.c.b16 %v761, %v760
        %v774 = vpack.c.b16 %v763, %v762
        %v775 = vpack.c.b16 %v765, %v764
        %v776 = vpack.c.b16 %v767, %v766
        %v777 = vpack.c.b16 %v769, %v768
        %786 = vmatprep.subr.bf16.mxu0 0
        %787 = vmatpush1.bf16.msra.mxu0 %v770
        %788 = vmatprep.subr.bf16.mxu0 0
        %789 = vmatpush1.bf16.msra.mxu0 %v771
        %790 = vmatprep.subr.bf16.mxu0 0
        %791 = vmatpush1.bf16.msra.mxu0 %v772
        %792 = vmatprep.subr.bf16.mxu0 0
        %793 = vmatpush1.bf16.msra.mxu0 %v773
        %794 = vmatprep.subr.bf16.mxu0 0
        %795 = vmatpush1.bf16.msra.mxu0 %v774
        %796 = vmatprep.subr.bf16.mxu0 0
        %797 = vmatpush1.bf16.msra.mxu0 %v775
        %798 = vmatprep.subr.bf16.mxu0 0
        %799 = vmatpush1.bf16.msra.mxu0 %v776
        %800 = vmatprep.subr.bf16.mxu0 0
        %801 = vmatpush1.bf16.msra.mxu0 %v777
        %802 = vmatprep.subr.bf16.mxu0 0
        %803 = vmatpush1.bf16.msra.mxu0 0
        %804 = vmatprep.subr.bf16.mxu0 0
        %805 = vmatpush1.bf16.msra.mxu0 0
        %806 = vmatprep.subr.bf16.mxu0 0
        %807 = vmatpush1.bf16.msra.mxu0 0
        %808 = vmatprep.subr.bf16.mxu0 0
        %809 = vmatpush1.bf16.msra.mxu0 0
        %810 = vmatprep.subr.bf16.mxu0 0
        %811 = vmatpush1.bf16.msra.mxu0 0
        %812 = vmatprep.subr.bf16.mxu0 0
        %813 = vmatpush1.bf16.msra.mxu0 0
        %814 = vmatprep.subr.bf16.mxu0 0
        %815 = vmatpush1.bf16.msra.mxu0 0
        %816 = vmatprep.subr.bf16.mxu0 0
        %817 = vmatpush1.bf16.msra.mxu0 0
        %818 = vmatprep.mubr.bf16.mxu0 0
        %819 = vmatmul.mubr.bf16.gmra.mrb[0].mxu0 %v721
        %v820 = vpop.f32.mrb[0].mxu0
        %v821 = vadd.f32 0.0, %v820
        %v822 = vpop.f32.mrb[0].mxu0
        %v823 = vpop.f32.mrb[0].mxu0
        %v824 = vadd.f32 0.0, %v823
        %v825 = vpop.f32.mrb[0].mxu0
        %826 = vdwg.mxu0
        %v827 = vadd.f32 %v715, %v821
        %v828 = vadd.f32 %v718, %v824
        %v829 = vxor.u32 %v827, 2147483648
        %v830 = vxor.u32 %v828, 2147483648
        %v831 = vmul.f32 %v829, 1.442695
        %v832 = vpow.pop %v831
        %v833 = vmul.f32 %v830, 1.442695
        %v834 = vpow.pop %v833
        %v835 = vadd.f32 %v832, 1.0
        %v836 = vadd.f32 %v834, 1.0
        %v837 = vrcp.pop %v835
        %v838 = vmul.f32 1.0, %v837
        %v839 = vrcp.pop %v836
        %v840 = vmul.f32 1.0, %v839
        %841 = vrot.lane.b32.xlu0 %v838, 96
        %v842 = vpop.permute.xlu0 %841
        %843 = vrot.lane.b32.xlu0 %v840, 96
        %v844 = vpop.permute.xlu0 %843
        %845 = vrot.lane.b32.xlu0 %v715, 64
        %v846 = vpop.permute.xlu0 %845
        %847 = vrot.lane.b32.xlu0 %v718, 64
        %v848 = vpop.permute.xlu0 %847
        %849 = vrot.lane.b32.xlu0 %v821, 64
        %v850 = vpop.permute.xlu0 %849
        %851 = vrot.lane.b32.xlu0 %v824, 64
        %v852 = vpop.permute.xlu0 %851
        %v853 = vld [vmem:[%s7] sm:$0x1]
        %v855 = vlaneseq
        %v856 = vshrl.u32 %v855, 7
        %v857 = vsub.s32 0, %v856
        %v858 = vrot.slane %v853, %v857
        %v860 = vadd.f32 %v850, %v858
        %v861 = vadd.f32 %v852, %v858
        %v862 = vmul.f32 %v838, %v860
        %v863 = vmul.f32 %v840, %v861
        %v864 = vadd.f32 %v846, %v862
        %v865 = vadd.f32 %v848, %v863
        %v866 = vtanh.pop %v864
        %v867 = vtanh.pop %v865
        %v868 = vsub.f32 1.0, %v842
        %v869 = vsub.f32 1.0, %v844
        %v870 = vmul.f32 %v868, %v866
        %v871 = vmul.f32 %v869, %v867
        %v872 = vmul.f32 %v842, %v521
        %v873 = vmul.f32 %v844, %v522
        %v874 = vadd.f32 %v870, %v872
        %v875 = vadd.f32 %v871, %v873
        %876 = vst [vmem:[#allocation2] sm:$0xff] %v874
        %877 = vst [vmem:[#allocation2 + $0x8] sm:$0xff] %v875
        %v878 = vpack.c.bf16 %v875, %v874
        %v879 = vld [vmem:[#allocation12] sm:$0xf]
        %v880 = vld [vmem:[#allocation12 + $0x4] sm:$0xf]
        %v881 = vld [vmem:[#allocation12 + $0x8] sm:$0xf]
        %v882 = vld [vmem:[#allocation12 + $0xc] sm:$0xf]
        %v883 = vld [vmem:[#allocation12 + $0x10] sm:$0xf]
        %v884 = vld [vmem:[#allocation12 + $0x14] sm:$0xf]
        %v885 = vld [vmem:[#allocation12 + $0x18] sm:$0xf]
        %v886 = vld [vmem:[#allocation12 + $0x1c] sm:$0xf]
        %v887 = vld [vmem:[#allocation12 + $0x20] sm:$0xf]
        %v888 = vld [vmem:[#allocation12 + $0x24] sm:$0xf]
        %v889 = vld [vmem:[#allocation12 + $0x28] sm:$0xf]
        %v890 = vld [vmem:[#allocation12 + $0x2c] sm:$0xf]
        %v891 = vld [vmem:[#allocation12 + $0x30] sm:$0xf]
        %v892 = vld [vmem:[#allocation12 + $0x34] sm:$0xf]
        %v893 = vld [vmem:[#allocation12 + $0x38] sm:$0xf]
        %v894 = vld [vmem:[#allocation12 + $0x3c] sm:$0xf]
        %v895 = vld [vmem:[%s9] sm:$0x1]
        %v897 = vlaneseq
        %v898 = vshrl.u32 %v897, 7
        %v899 = vsub.s32 0, %v898
        %v900 = vrot.slane %v895, %v899
        %v918 = vunpack.c.l.b16 %v879
        %v919 = vunpack.c.l.b16 %v880
        %v920 = vunpack.c.l.b16 %v881
        %v921 = vunpack.c.l.b16 %v882
        %v922 = vunpack.c.l.b16 %v883
        %v923 = vunpack.c.l.b16 %v884
        %v924 = vunpack.c.l.b16 %v885
        %v925 = vunpack.c.l.b16 %v886
        %v926 = vunpack.c.l.b16 %v887
        %v927 = vunpack.c.l.b16 %v888
        %v928 = vunpack.c.l.b16 %v889
        %v929 = vunpack.c.l.b16 %v890
        %v930 = vunpack.c.l.b16 %v891
        %v931 = vunpack.c.l.b16 %v892
        %v932 = vunpack.c.l.b16 %v893
        %v933 = vunpack.c.l.b16 %v894
        %v934 = vpack.c.b16 %v919, %v918
        %v935 = vpack.c.b16 %v921, %v920
        %v936 = vpack.c.b16 %v923, %v922
        %v937 = vpack.c.b16 %v925, %v924
        %v938 = vpack.c.b16 %v927, %v926
        %v939 = vpack.c.b16 %v929, %v928
        %v940 = vpack.c.b16 %v931, %v930
        %v941 = vpack.c.b16 %v933, %v932
        %950 = vmatprep.subr.bf16.mxu0 0
        %951 = vmatpush1.bf16.msra.mxu0 %v934
        %952 = vmatprep.subr.bf16.mxu0 0
        %953 = vmatpush1.bf16.msra.mxu0 %v935
        %954 = vmatprep.subr.bf16.mxu0 0
        %955 = vmatpush1.bf16.msra.mxu0 %v936
        %956 = vmatprep.subr.bf16.mxu0 0
        %957 = vmatpush1.bf16.msra.mxu0 %v937
        %958 = vmatprep.subr.bf16.mxu0 0
        %959 = vmatpush1.bf16.msra.mxu0 %v938
        %960 = vmatprep.subr.bf16.mxu0 0
        %961 = vmatpush1.bf16.msra.mxu0 %v939
        %962 = vmatprep.subr.bf16.mxu0 0
        %963 = vmatpush1.bf16.msra.mxu0 %v940
        %964 = vmatprep.subr.bf16.mxu0 0
        %965 = vmatpush1.bf16.msra.mxu0 %v941
        %966 = vmatprep.subr.bf16.mxu0 0
        %967 = vmatpush1.bf16.msra.mxu0 0
        %968 = vmatprep.subr.bf16.mxu0 0
        %969 = vmatpush1.bf16.msra.mxu0 0
        %970 = vmatprep.subr.bf16.mxu0 0
        %971 = vmatpush1.bf16.msra.mxu0 0
        %972 = vmatprep.subr.bf16.mxu0 0
        %973 = vmatpush1.bf16.msra.mxu0 0
        %974 = vmatprep.subr.bf16.mxu0 0
        %975 = vmatpush1.bf16.msra.mxu0 0
        %976 = vmatprep.subr.bf16.mxu0 0
        %977 = vmatpush1.bf16.msra.mxu0 0
        %978 = vmatprep.subr.bf16.mxu0 0
        %979 = vmatpush1.bf16.msra.mxu0 0
        %980 = vmatprep.subr.bf16.mxu0 0
        %981 = vmatpush1.bf16.msra.mxu0 0
        %982 = vmatprep.mubr.bf16.mxu0 0
        %983 = vmatmul.mubr.bf16.gmra.mrb[0].mxu0 %v878
        %v984 = vpop.f32.mrb[0].mxu0
        %v985 = vadd.f32 %v900, %v984
        %v986 = vpop.f32.mrb[0].mxu0
        %v987 = vpop.f32.mrb[0].mxu0
        %v988 = vadd.f32 %v900, %v987
        %v989 = vpop.f32.mrb[0].mxu0
        %990 = vdwg.mxu0
        %991 = vst [vmem:[%s505] sm:$0xff] %v985
        %992 = vst [vmem:[%s505 + $0x8] sm:$0xff] %v988
        %p993 = scmp.eq.s32.totalorder %s38, 7
        // Predicated region
        $region89: #{tpu_custom_call.1} parent=59 // pred_check
          %p994 = pneg %p993
        $region90: #{tpu_custom_call.1} parent=59 // pred_check_branch
          %996 = sbr.rel (%p994) target = $region92
        $region91: #{tpu_custom_call.1} parent=59 // pred_region
          %997 = vst [vmem:[#allocation15] sm:$0xff] %v874
          %998 = vst [vmem:[#allocation15 + $0x8] sm:$0xff] %v875
        $region92: #{tpu_custom_call.1} parent=59 // pred_fallthru
          _
        %s999 = sand.u32 %s277, 1
        %s1000 = scalar_lea.sflag [#allocation5], %s999
        %s1001 = sand.u32 %s277, 1
        %s1002 = smul.addr %s1001, 16
        %s1003 = scalar_lea.vmem [#allocation14], %s1002
        // Predicated region
        $region93: #{tpu_custom_call.1} parent=59 // pred_check
          %p1004 = pneg %p287
        $region94: #{tpu_custom_call.1} parent=59 // pred_check_branch
          %1006 = sbr.rel (%p1004) target = $region96
        $region95: #{tpu_custom_call.1} parent=59 // pred_region
          %s1007 = smul.u32 2, %s37
          %s1009 = ssub.s32 256, 256
          %1010 = vsyncadd %s1000, %s1009
          %s1011 = smul.addr %s38, 2
          %s1012 = sadd.s32 %s1007, %s1011
          %s1013 = smul.addr %s1012, 128
          %s1014 = scalar_lea.hbm %s10, %s1013
          %s1015 = sshll.u32 %s1003, 4
          %s1016 = int_to_ptr.vmem [resolvable:$true] %s1015
          %1021 = dma.vmem_to_hbm [thread:$0]  %s1016, 256, %s1014, %s1000, 128, 128, 8
        $region96: #{tpu_custom_call.1} parent=59 // pred_fallthru
          _
        // Predicated region
        $region97: #{tpu_custom_call.1} parent=59 // pred_check
          %p1022 = pneg %p313
        $region98: #{tpu_custom_call.1} parent=59 // pred_check_branch
          %1024 = sbr.rel (%p1022) target = $region100
        $region99: #{tpu_custom_call.1} parent=59 // pred_region
          %s1025 = smul.u32 2, %s37
          %s1027 = ssub.s32 256, 256
          %1028 = vsyncadd [#allocation16], %s1027
          %s1029 = smul.addr %s1025, 128
          %s1030 = scalar_lea.hbm %s11, %s1029
          %s1031 = sshll.u32 [#allocation15], 4
          %s1032 = int_to_ptr.vmem [resolvable:$true] %s1031
          %1037 = dma.vmem_to_hbm [thread:$0]  %s1032, 256, %s1030, [#allocation16], 128, 128, 8
        $region100: #{tpu_custom_call.1} parent=59 // pred_fallthru
          _
        // Predicated region
        $region101: #{tpu_custom_call.1} parent=59 // pred_check
          %p1038 = pneg %p313
        $region102: #{tpu_custom_call.1} parent=59 // pred_check_branch
          %1040 = sbr.rel (%p1038) target = $region104
        $region103: #{tpu_custom_call.1} parent=59 // pred_region
          %1041 = dma.done [#allocation16], 256
        $region104: #{tpu_custom_call.1} parent=59 // pred_fallthru
          _
      $region60: #{tpu_custom_call.1} parent=5 // pred_fallthru
        _
      %p1042 = scmp.le.s32.totalorder 2, %s28
      // Predicated region
      $region105: #{tpu_custom_call.1} parent=5 // pred_check
        %p1043 = pneg %p1042
      $region106: #{tpu_custom_call.1} parent=5 // pred_check_branch
        %1045 = sbr.rel (%p1043) target = $region108
      $region107: #{tpu_custom_call.1} parent=5 // pred_region
        %s1046 = ssub.s32 %s28, 2
        // Predicated region
        $region109: #{tpu_custom_call.1} parent=107 // pred_check
          %p1047 = pneg %p293
        $region110: #{tpu_custom_call.1} parent=107 // pred_check_branch
          %1049 = sbr.rel (%p1047) target = $region112
        $region111: #{tpu_custom_call.1} parent=107 // pred_region
          %s1050 = sand.u32 %s278, 1
          %s1051 = scalar_lea.sflag [#allocation5], %s1050
          %s1052 = sand.u32 %s278, 1
          %s1053 = smul.addr %s1052, 16
          %s1054 = scalar_lea.vmem [#allocation14], %s1053
          %1055 = dma.done %s1051, 256
        $region112: #{tpu_custom_call.1} parent=107 // pred_fallthru
          _
      $region108: #{tpu_custom_call.1} parent=5 // pred_fallthru
        _
    $region6: #{tpu_custom_call.1} parent=1 // loop_footer
      %s32 = sadd.s32 1, %s28
    $region7: #{tpu_custom_call.1} parent=1 // loop_footer_branch
      %27 = sbr.rel target = $region3
    $region8: #{tpu_custom_call.1} parent=1 // loop_exit
      _
    %1056 = vsyncpa [#allocation4], 1
    %s1057 = scalar_lea.sflag [#allocation4], 1
    %1058 = vsyncpa %s1057, 1
    %1059 = vsyncpa [#allocation7], 1
    %1060 = vsyncpa [#allocation10], 1
    %1061 = vsyncpa [#allocation13], 1
    %1062 = vsyncpa [#allocation5], 1
    %s1063 = scalar_lea.sflag [#allocation5], 1
    %1064 = vsyncpa %s1063, 1
    %1065 = vsyncpa [#allocation16], 1

</llo_original>
